<compile_context>
chip_gen: v5e
topology: v5e:2x2
jax: 0.10.0
libtpu: 0.0.40
codegen_flags: <defaults>
</compile_context>

<pallas_src>
import jax
import jax.numpy as jnp
from jax.experimental import pallas as pl
from jax.experimental.pallas import tpu as pltpu

_LANE = 128
_SUBLANE = 8


def _round_up(x, m):
    return -(-x // m) * m


def _round_down(x, m):
    return (x // m) * m


# --------------------------------------------------------------------------
# Kernels
# --------------------------------------------------------------------------
def _final_conv_vpu_kernel(w_ref, b_ref, x_ref, o_ref):
    """Small-channel path: unrolled scalar-splat FMAs on the VPU.

    w_ref: SMEM (C_out*C_in,) f32   (row-major: w[o*C_in + c] = W[o, c])
    b_ref: SMEM (C_out,)      f32
    x_ref: VMEM (NB, C_in, TL)
    o_ref: VMEM (NB, C_out, TL)
    """
    _, c_in, _ = x_ref.shape
    c_out = o_ref.shape[1]

    # Load each input channel slab once (f32 accumulation).
    xs = [x_ref[:, c, :].astype(jnp.float32) for c in range(c_in)]

    for o in range(c_out):
        # Bias folded into the first FMA; weights are SMEM scalar splats.
        acc = w_ref[o * c_in] * xs[0] + b_ref[o]
        for c in range(1, c_in):
            acc = acc + w_ref[o * c_in + c] * xs[c]
        o_ref[:, o, :] = acc.astype(o_ref.dtype)


def _final_conv_mxu_kernel(w_ref, b_ref, x_ref, o_ref):
    """Large-channel path: MXU dot with f32 accumulation.

    w_ref: VMEM (C_out, C_in) f32
    b_ref: VMEM (C_out, 1)    f32
    x_ref: VMEM (C_in, TL)    (batch dim squeezed)
    o_ref: VMEM (C_out, TL)
    """
    w = w_ref[...].astype(jnp.float32)
    b = b_ref[...].astype(jnp.float32)
    x = x_ref[...].astype(jnp.float32)
    o_ref[...] = (jnp.dot(w, x, preferred_element_type=jnp.float32)
                  + b).astype(o_ref.dtype)


# --------------------------------------------------------------------------
# Block / grid selection
# --------------------------------------------------------------------------
def _choose_blocks(N, C_in, C_out, L, itemsize):
    """Pick (nb, l_tile, num_l): batch rows per step and L tiling."""
    c_in_pad = _round_up(C_in, _SUBLANE)
    c_out_pad = _round_up(C_out, _SUBLANE)

    # VMEM bytes per lane-column per batch row: padded in + out, f32
    # (conservative), times 2 for double buffering.
    vmem_per_lane = 2 * 4 * (c_in_pad + c_out_pad)
    # Real HBM bytes per lane-column per batch row (x read + y write).
    hbm_per_lane = itemsize * (C_in + C_out)

    VMEM_BUDGET = 8 << 20     # fits v5e 16 MiB / v7x 32 MiB scoped defaults
    TARGET_BYTES = 4 << 20    # ~4 MiB of real data per grid step
    MIN_GRID = 4              # >= 2 steps per TensorCore on v7x

    max_lanes = max(_LANE, _round_down(VMEM_BUDGET // vmem_per_lane, _LANE))

    # L tiling: full extent if it fits the VMEM budget, else the largest
    # 128-multiple tile under the budget.
    l_tile = L if L <= max_lanes else max_lanes
    num_l = pl.cdiv(L, l_tile)

    # Guarantee enough parallel grid steps for v7x's two TensorCores.
    if N * num_l < MIN_GRID and L > _LANE:
        want_l = min(pl.cdiv(MIN_GRID, N), pl.cdiv(L, _LANE))
        l_tile = _round_up(pl.cdiv(L, want_l), _LANE)
        num_l = pl.cdiv(L, l_tile)

    # Batch multiple rows per step when a single (C, l_tile) slab is small.
    nb_vmem = max(1, max_lanes // l_tile)
    nb_target = max(1, pl.cdiv(TARGET_BYTES, hbm_per_lane * l_tile))
    nb = min(N, nb_vmem, nb_target)

    # ...but never shrink the grid below MIN_GRID steps (when achievable).
    want_steps = min(MIN_GRID, N * num_l)
    need_nblocks = pl.cdiv(want_steps, num_l)
    nb = max(1, min(nb, N // need_nblocks))
    return nb, l_tile, num_l


# --------------------------------------------------------------------------
# Public wrapper
# --------------------------------------------------------------------------
def final_conv(x, weight, bias, *, use_pallas=None):
    """1x1 Conv1d forward (FinalConv).

    Args:
      x:      (N, C_in, L)
      weight: (C_out, C_in, 1)   (PyTorch Conv1d weight shape)
      bias:   (C_out,)
      use_pallas: force/skip the Pallas path (None -> auto by input size).
    Returns:
      (N, C_out, L) in x.dtype.
    """
    N, C_in, L = x.shape
    C_out = weight.shape[0]
    w_mat = weight[:, :, 0]                      # (C_out, C_in)

    # Tiny inputs: a single fused einsum beats any kernel launch.
    if use_pallas is None:
        use_pallas = N * C_in * L * x.dtype.itemsize >= (256 * 1024)
    if not use_pallas:
        y = jnp.einsum("ncl,oc->nol", x, w_mat) + bias[None, :, None]
        return y.astype(x.dtype)

    vpu_path = (C_in <= 32 and C_out <= 64)
    nb, l_tile, num_l = _choose_blocks(N, C_in, C_out, L, x.dtype.itemsize)
    if not vpu_path:
        nb = 1                                    # MXU path: one row per step
    grid = (pl.cdiv(N, nb), num_l)

    flops = 2 * N * C_out * C_in * L
    bytes_accessed = (x.dtype.itemsize * (N * C_in * L + N * C_out * L)
                      + 4 * (C_out * C_in + C_out))

    if vpu_path:
        # Weights/bias as flat SMEM scalars: no padded VMEM tiles, no
        # per-step lane/sublane broadcasts.
        w_flat = w_mat.reshape(-1).astype(jnp.float32)     # (C_out*C_in,)
        b_vec = bias.astype(jnp.float32)                   # (C_out,)
        kernel = _final_conv_vpu_kernel
        in_specs = [
            pl.BlockSpec(memory_space=pltpu.MemorySpace.SMEM),
            pl.BlockSpec(memory_space=pltpu.MemorySpace.SMEM),
            pl.BlockSpec((nb, C_in, l_tile), lambda n, l: (n, 0, l)),
        ]
        out_spec = pl.BlockSpec((nb, C_out, l_tile), lambda n, l: (n, 0, l))
        args = (w_flat, b_vec, x)
    else:
        w2d = w_mat.astype(jnp.float32)                    # (C_out, C_in)
        b_col = bias.reshape(C_out, 1).astype(jnp.float32)
        kernel = _final_conv_mxu_kernel
        in_specs = [
            pl.BlockSpec((C_out, C_in), lambda n, l: (0, 0)),
            pl.BlockSpec((C_out, 1), lambda n, l: (0, 0)),
            pl.BlockSpec((None, C_in, l_tile), lambda n, l: (n, 0, l)),
        ]
        out_spec = pl.BlockSpec((None, C_out, l_tile), lambda n, l: (n, 0, l))
        args = (w2d, b_col, x)

    return pl.pallas_call(
        kernel,
        out_shape=jax.ShapeDtypeStruct((N, C_out, L), x.dtype),
        grid_spec=pltpu.PrefetchScalarGridSpec(
            num_scalar_prefetch=0,
            grid=grid,
            in_specs=in_specs,
            out_specs=out_spec,
        ),
        compiler_params=pltpu.CompilerParams(
            dimension_semantics=("parallel", "parallel"),
            vmem_limit_bytes=32 * 1024 * 1024,
        ),
        cost_estimate=pl.CostEstimate(
            flops=flops, transcendentals=0, bytes_accessed=bytes_accessed),
    )(*args)


# --------------------------------------------------------------------------
# Demo / correctness checks
# --------------------------------------------------------------------------
if __name__ == "__main__":
    key = jax.random.PRNGKey(0)

    def ref_conv(x, w, b):
        return jnp.einsum("ncl,oc->nol", x, w[:, :, 0]) + b[None, :, None]

    def make(key, n, ci, co, length):
        k1, k2, k3, key = jax.random.split(key, 4)
        x = jax.random.normal(k1, (n, ci, length), dtype=jnp.float32)
        w = jax.random.normal(k2, (co, ci, 1), dtype=jnp.float32) * 0.1
        b = jax.random.normal(k3, (co,), dtype=jnp.float32) * 0.1
        return key, x, w, b

    # Case 1: the module's own tiny shape, forced through the Pallas path.
    key, x1, w1, b1 = make(key, 2, 4, 3, 16)
    y1 = final_conv(x1, w1, b1, use_pallas=True)
    jax.block_until_ready(y1)
    assert y1.shape == (2, 3, 16)
    assert jnp.allclose(y1, ref_conv(x1, w1, b1), atol=1e-5, rtol=1e-5)

    # Case 2: batched-N blocking (multiple rows per grid step, VPU path).
    key, x2, w2, b2 = make(key, 8, 4, 3, 1000)
    y2 = final_conv(x2, w2, b2, use_pallas=True)
    jax.block_until_ready(y2)
    assert jnp.allclose(y2, ref_conv(x2, w2, b2), atol=1e-5, rtol=1e-5)

    # Case 3: N == 1 -> L split for v7x's two cores, partial trailing tile.
    key, x3, w3, b3 = make(key, 1, 4, 3, 1000)
    y3 = final_conv(x3, w3, b3, use_pallas=True)
    jax.block_until_ready(y3)
    assert jnp.allclose(y3, ref_conv(x3, w3, b3), atol=1e-5, rtol=1e-5)

    # Case 4: larger channel counts -> MXU path.
    key, x4, w4, b4 = make(key, 2, 48, 40, 256)
    y4 = final_conv(x4, w4, b4, use_pallas=True)
    jax.block_until_ready(y4)
    assert jnp.allclose(y4, ref_conv(x4, w4, b4), atol=1e-4, rtol=1e-4)

    # Case 5: tiny-input auto path (einsum fallback, no pallas_call launch).
    y5 = final_conv(x1, w1, b1)
    jax.block_until_ready(y5)
    assert jnp.allclose(y5, ref_conv(x1, w1, b1), atol=1e-5, rtol=1e-5)

    print("KERNEL_OK")
</pallas_src>

<mosaic_0001>
module attributes {stable_mosaic.version = 11 : i64} {
  func.func @_final_conv_vpu_kernel(%arg0: i32, %arg1: i32, %arg2: memref<12xf32, #tpu.memory_space<smem>>, %arg3: memref<3xf32, #tpu.memory_space<smem>>, %arg4: memref<1x4x16xf32, #tpu.memory_space<vmem>>, %arg5: memref<1x3x16xf32, #tpu.memory_space<vmem>>) attributes {dimension_semantics = [#tpu.dimension_semantics<parallel>, #tpu.dimension_semantics<parallel>], iteration_bounds = array<i64: 2, 1>, scalar_prefetch = 0 : i64, scratch_operands = 0 : i64, tpu.core_type = #tpu.core_type<tc>, window_params = [{transform_indices = @transform_0, window_bounds = array<i64: 12>}, {transform_indices = @transform_1, window_bounds = array<i64: 3>}, {transform_indices = @transform_2, window_bounds = array<i64: 1, 4, 16>}, {transform_indices = @transform_3, window_bounds = array<i64: 1, 3, 16>}]} {
    %c0 = arith.constant 0 : index
    %c0_0 = arith.constant 0 : index
    %c0_1 = arith.constant 0 : index
    %0 = vector.load %arg4[%c0, %c0_0, %c0_1] : memref<1x4x16xf32, #tpu.memory_space<vmem>>, vector<1x1x16xf32>
    %1 = vector.shape_cast %0 : vector<1x1x16xf32> to vector<1x16xf32>
    %c0_2 = arith.constant 0 : index
    %c1 = arith.constant 1 : index
    %c0_3 = arith.constant 0 : index
    %2 = vector.load %arg4[%c0_2, %c1, %c0_3] : memref<1x4x16xf32, #tpu.memory_space<vmem>>, vector<1x1x16xf32>
    %3 = vector.shape_cast %2 : vector<1x1x16xf32> to vector<1x16xf32>
    %c0_4 = arith.constant 0 : index
    %c2 = arith.constant 2 : index
    %c0_5 = arith.constant 0 : index
    %4 = vector.load %arg4[%c0_4, %c2, %c0_5] : memref<1x4x16xf32, #tpu.memory_space<vmem>>, vector<1x1x16xf32>
    %5 = vector.shape_cast %4 : vector<1x1x16xf32> to vector<1x16xf32>
    %c0_6 = arith.constant 0 : index
    %c3 = arith.constant 3 : index
    %c0_7 = arith.constant 0 : index
    %6 = vector.load %arg4[%c0_6, %c3, %c0_7] : memref<1x4x16xf32, #tpu.memory_space<vmem>>, vector<1x1x16xf32>
    %7 = vector.shape_cast %6 : vector<1x1x16xf32> to vector<1x16xf32>
    %c0_8 = arith.constant 0 : index
    %8 = memref.load %arg2[%c0_8] : memref<12xf32, #tpu.memory_space<smem>>
    %9 = vector.broadcast %8 : f32 to vector<1x16xf32>
    %10 = arith.mulf %9, %1 : vector<1x16xf32>
    %c0_9 = arith.constant 0 : index
    %11 = memref.load %arg3[%c0_9] : memref<3xf32, #tpu.memory_space<smem>>
    %12 = vector.broadcast %11 : f32 to vector<1x16xf32>
    %13 = arith.addf %10, %12 : vector<1x16xf32>
    %c1_10 = arith.constant 1 : index
    %14 = memref.load %arg2[%c1_10] : memref<12xf32, #tpu.memory_space<smem>>
    %15 = vector.broadcast %14 : f32 to vector<1x16xf32>
    %16 = arith.mulf %15, %3 : vector<1x16xf32>
    %17 = arith.addf %13, %16 : vector<1x16xf32>
    %c2_11 = arith.constant 2 : index
    %18 = memref.load %arg2[%c2_11] : memref<12xf32, #tpu.memory_space<smem>>
    %19 = vector.broadcast %18 : f32 to vector<1x16xf32>
    %20 = arith.mulf %19, %5 : vector<1x16xf32>
    %21 = arith.addf %17, %20 : vector<1x16xf32>
    %c3_12 = arith.constant 3 : index
    %22 = memref.load %arg2[%c3_12] : memref<12xf32, #tpu.memory_space<smem>>
    %23 = vector.broadcast %22 : f32 to vector<1x16xf32>
    %24 = arith.mulf %23, %7 : vector<1x16xf32>
    %25 = arith.addf %21, %24 : vector<1x16xf32>
    %c0_13 = arith.constant 0 : index
    %c0_14 = arith.constant 0 : index
    %c0_15 = arith.constant 0 : index
    %26 = vector.load %arg5[%c0_13, %c0_14, %c0_15] : memref<1x3x16xf32, #tpu.memory_space<vmem>>, vector<1x1x16xf32>
    %27 = vector.shape_cast %26 : vector<1x1x16xf32> to vector<1x16xf32>
    %28 = vector.shape_cast %25 : vector<1x16xf32> to vector<1x1x16xf32>
    tpu.vector_store %arg5[%c0_13, %c0_14, %c0_15], %28 {strides = array<i32>} : memref<1x3x16xf32, #tpu.memory_space<vmem>>, vector<1x1x16xf32>,
    %c4 = arith.constant 4 : index
    %29 = memref.load %arg2[%c4] : memref<12xf32, #tpu.memory_space<smem>>
    %30 = vector.broadcast %29 : f32 to vector<1x16xf32>
    %31 = arith.mulf %30, %1 : vector<1x16xf32>
    %c1_16 = arith.constant 1 : index
    %32 = memref.load %arg3[%c1_16] : memref<3xf32, #tpu.memory_space<smem>>
    %33 = vector.broadcast %32 : f32 to vector<1x16xf32>
    %34 = arith.addf %31, %33 : vector<1x16xf32>
    %c5 = arith.constant 5 : index
    %35 = memref.load %arg2[%c5] : memref<12xf32, #tpu.memory_space<smem>>
    %36 = vector.broadcast %35 : f32 to vector<1x16xf32>
    %37 = arith.mulf %36, %3 : vector<1x16xf32>
    %38 = arith.addf %34, %37 : vector<1x16xf32>
    %c6 = arith.constant 6 : index
    %39 = memref.load %arg2[%c6] : memref<12xf32, #tpu.memory_space<smem>>
    %40 = vector.broadcast %39 : f32 to vector<1x16xf32>
    %41 = arith.mulf %40, %5 : vector<1x16xf32>
    %42 = arith.addf %38, %41 : vector<1x16xf32>
    %c7 = arith.constant 7 : index
    %43 = memref.load %arg2[%c7] : memref<12xf32, #tpu.memory_space<smem>>
    %44 = vector.broadcast %43 : f32 to vector<1x16xf32>
    %45 = arith.mulf %44, %7 : vector<1x16xf32>
    %46 = arith.addf %42, %45 : vector<1x16xf32>
    %c0_17 = arith.constant 0 : index
    %c1_18 = arith.constant 1 : index
    %c0_19 = arith.constant 0 : index
    %47 = vector.load %arg5[%c0_17, %c1_18, %c0_19] : memref<1x3x16xf32, #tpu.memory_space<vmem>>, vector<1x1x16xf32>
    %48 = vector.shape_cast %47 : vector<1x1x16xf32> to vector<1x16xf32>
    %49 = vector.shape_cast %46 : vector<1x16xf32> to vector<1x1x16xf32>
    tpu.vector_store %arg5[%c0_17, %c1_18, %c0_19], %49 {strides = array<i32>} : memref<1x3x16xf32, #tpu.memory_space<vmem>>, vector<1x1x16xf32>,
    %c8 = arith.constant 8 : index
    %50 = memref.load %arg2[%c8] : memref<12xf32, #tpu.memory_space<smem>>
    %51 = vector.broadcast %50 : f32 to vector<1x16xf32>
    %52 = arith.mulf %51, %1 : vector<1x16xf32>
    %c2_20 = arith.constant 2 : index
    %53 = memref.load %arg3[%c2_20] : memref<3xf32, #tpu.memory_space<smem>>
    %54 = vector.broadcast %53 : f32 to vector<1x16xf32>
    %55 = arith.addf %52, %54 : vector<1x16xf32>
    %c9 = arith.constant 9 : index
    %56 = memref.load %arg2[%c9] : memref<12xf32, #tpu.memory_space<smem>>
    %57 = vector.broadcast %56 : f32 to vector<1x16xf32>
    %58 = arith.mulf %57, %3 : vector<1x16xf32>
    %59 = arith.addf %55, %58 : vector<1x16xf32>
    %c10 = arith.constant 10 : index
    %60 = memref.load %arg2[%c10] : memref<12xf32, #tpu.memory_space<smem>>
    %61 = vector.broadcast %60 : f32 to vector<1x16xf32>
    %62 = arith.mulf %61, %5 : vector<1x16xf32>
    %63 = arith.addf %59, %62 : vector<1x16xf32>
    %c11 = arith.constant 11 : index
    %64 = memref.load %arg2[%c11] : memref<12xf32, #tpu.memory_space<smem>>
    %65 = vector.broadcast %64 : f32 to vector<1x16xf32>
    %66 = arith.mulf %65, %7 : vector<1x16xf32>
    %67 = arith.addf %63, %66 : vector<1x16xf32>
    %c0_21 = arith.constant 0 : index
    %c2_22 = arith.constant 2 : index
    %c0_23 = arith.constant 0 : index
    %68 = vector.load %arg5[%c0_21, %c2_22, %c0_23] : memref<1x3x16xf32, #tpu.memory_space<vmem>>, vector<1x1x16xf32>
    %69 = vector.shape_cast %68 : vector<1x1x16xf32> to vector<1x16xf32>
    %70 = vector.shape_cast %67 : vector<1x16xf32> to vector<1x1x16xf32>
    tpu.vector_store %arg5[%c0_21, %c2_22, %c0_23], %70 {strides = array<i32>} : memref<1x3x16xf32, #tpu.memory_space<vmem>>, vector<1x1x16xf32>,
    return
  }
  func.func @transform_0(%arg0: i32, %arg1: i32) -> i32 {
    %c0_i32 = arith.constant 0 : i32
    %c0_i32_0 = arith.constant 0 : i32
    return %c0_i32 : i32
  }
  func.func @transform_1(%arg0: i32, %arg1: i32) -> i32 {
    %c0_i32 = arith.constant 0 : i32
    %c0_i32_0 = arith.constant 0 : i32
    return %c0_i32 : i32
  }
  func.func @transform_2(%arg0: i32, %arg1: i32) -> (i32, i32, i32) {
    %c0_i32 = arith.constant 0 : i32
    %c0_i32_0 = arith.constant 0 : i32
    return %arg0, %c0_i32, %arg1 : i32, i32, i32
  }
  func.func @transform_3(%arg0: i32, %arg1: i32) -> (i32, i32, i32) {
    %c0_i32 = arith.constant 0 : i32
    %c0_i32_0 = arith.constant 0 : i32
    return %arg0, %c0_i32, %arg1 : i32, i32, i32
  }
}

</mosaic_0001>

<llo_original>
// kernel: tpu_custom_call.1
$region0: #{tpu_custom_call.1}
  #allocation0 [shape = 'u32[]', space=smem, size = 0x4, offset = 0x4, fixed_abs, tag = 'smem constant byte address 0x4 - core index']
  #allocation1 [shape = 'u32[72,128]{1,0:T(1,128)}', space=vmem, size = 0x9000, scoped, tag = 'internal scratch']
  %s0 = inlined_call_operand.hbm [shape: f32[12], index: 0, kind: input, shape index: {}]
  %s1 = inlined_call_operand.hbm [shape: f32[3], index: 1, kind: input, shape index: {}]
  %s2 = inlined_call_operand.hbm [shape: f32[2,4,16], index: 2, kind: input, shape index: {}]
  %s3 = inlined_call_operand.vmem [shape: f32[2,3,16], index: 3, kind: output, shape index: {}]
  %s4 = sld [smem:[#allocation0]]
  $region57: #{tpu_custom_call.1} parent=0
    _
  %s6 = ssub.s32 1, %s4
  %s7 = scalar_select 0, %s6, %s4
  $region1: #{tpu_custom_call.1} parent=0
    #allocation2 [shape = 'u8[512]{0}', space=smem, size = 0x200, scoped, tag = 'input window, operand 0, single buffered']
    #allocation3 [shape = 's32[2]{0}', space=sflag, size = 0x8, scoped, tag = 'scoped memory for tpu_custom_call.1']
    #allocation4 [shape = 's32[2]{0}', space=sflag, size = 0x8, scoped, tag = 'scoped memory for tpu_custom_call.1']
    #allocation5 [shape = 'u8[512]{0}', space=smem, size = 0x200, scoped, tag = 'input window, operand 1, single buffered']
    #allocation6 [shape = 's32[1]{0}', space=sflag, size = 0x4, scoped, tag = 'scoped memory for tpu_custom_call.1']
    #allocation7 [shape = 'u8[4096]{0}', space=vmem, size = 0x1000, scoped, tag = 'input window, operand 2']
    %8 = vsyncpa [#allocation4], 0
    %9 = vsyncpa [#allocation6], 0
    %10 = vsyncpa [#allocation3], 0
    %s11 = scalar_lea.sflag [#allocation3], 1
    %12 = vsyncpa %s11, 0
    loop: start=0, step=1, limit=4
    $region2: #{tpu_custom_call.1} parent=1 // loop_pre_header
      _
    $region3: #{tpu_custom_call.1} parent=1 // loop_header
      %s14 = sphi 0, %s18
      %p15 = scmp.ge.s32.totalorder %s14, 4
      %s21 = sphi 0, %s33
      %s22 = sphi 0, %s29
      %s23 = sphi 0, %s21
      %s24 = sphi 0, %s22
      %s25 = sphi 0, %s23
      %s26 = sphi 0, %s24
      %s34 = sphi 0, %s34
      %s36 = sphi 0, %s34
      %s37 = sphi 0, %s36
      %s51 = sphi 0, %s37
      %s55 = sphi 0, %s55
      %s57 = sphi 0, %s55
      %s58 = sphi 0, %s57
      %s72 = sphi 0, %s58
      %s80 = sphi 0, %s82
      %s83 = sphi 0, %s80
      %s84 = sphi 0, %s83
      %s100 = sphi 0, %s84
      %s108 = sphi 0, %s110
      %s111 = sphi 0, %s108
      %s112 = sphi 0, %s111
      %s128 = sphi 0, %s112
    $region4: #{tpu_custom_call.1} parent=1 // loop_header_branch
      %17 = sbr.rel (%p15) target = $region8
    $region5: #{tpu_custom_call.1} parent=1 // loop_body
      %s19 = ssub.s32 %s14, 1
      %s20 = ssub.s32 %s14, 2
      %s27 = sadd.s32 1, %s22
      %p28 = scmp.ge.s32.totalorder %s27, 1
      %s29 = scalar_select %p28, 0, %s27
      %s30 = sadd.s32 1, %s21
      %s31 = scalar_select %p28, %s30, %s21
      %p32 = scmp.ge.s32.totalorder %s31, 2
      %s33 = scalar_select %p32, 0, %s31
      %s35 = sadd.s32 %s34, 1
      %p38 = scmp.eq.s32.totalorder %s14, 1
      %p39 = scmp.ne.s32.totalorder %s34, %s36
      %p40 = scmp.eq.s32.totalorder %s14, 0
      %p41 = por %p39, %p40
      %p42 = scmp.ne.s32.totalorder %s34, %s36
      %p43 = scmp.eq.s32.totalorder %s19, 1
      %p44 = por %p42, %p43
      %p45 = scmp.ne.s32.totalorder %s36, %s37
      %p46 = scmp.eq.s32.totalorder %s19, 0
      %p47 = por %p45, %p46
      %p48 = scmp.ne.s32.totalorder %s36, %s37
      %p49 = scmp.eq.s32.totalorder %s20, 1
      %p50 = por %p48, %p49
      %p52 = scmp.ne.s32.totalorder %s37, %s51
      %p53 = scmp.eq.s32.totalorder %s20, 0
      %p54 = por %p52, %p53
      %s56 = sadd.s32 %s55, 1
      %p59 = scmp.eq.s32.totalorder %s14, 1
      %p60 = scmp.ne.s32.totalorder %s55, %s57
      %p61 = scmp.eq.s32.totalorder %s14, 0
      %p62 = por %p60, %p61
      %p63 = scmp.ne.s32.totalorder %s55, %s57
      %p64 = scmp.eq.s32.totalorder %s19, 1
      %p65 = por %p63, %p64
      %p66 = scmp.ne.s32.totalorder %s57, %s58
      %p67 = scmp.eq.s32.totalorder %s19, 0
      %p68 = por %p66, %p67
      %p69 = scmp.ne.s32.totalorder %s57, %s58
      %p70 = scmp.eq.s32.totalorder %s20, 1
      %p71 = por %p69, %p70
      %p73 = scmp.ne.s32.totalorder %s58, %s72
      %p74 = scmp.eq.s32.totalorder %s20, 0
      %p75 = por %p73, %p74
      %s76 = ssub.s32 %s21, %s33
      %s77 = ssub.s32 %s22, %s29
      %s78 = sor.u32 %s76, %s77
      %p79 = scmp.eq.s32.totalorder %s78, 0
      %s81 = sadd.s32 %s80, 1
      %s82 = scalar_select %p79, %s80, %s81
      %p85 = pneg %p79
      %p86 = scmp.eq.s32.totalorder %s14, 1
      %p87 = por %p85, %p86
      %p88 = scmp.ne.s32.totalorder %s80, %s83
      %p89 = scmp.eq.s32.totalorder %s14, 0
      %p90 = por %p88, %p89
      %p91 = scmp.ne.s32.totalorder %s80, %s83
      %p92 = scmp.eq.s32.totalorder %s19, 1
      %p93 = por %p91, %p92
      %p94 = scmp.ne.s32.totalorder %s83, %s84
      %p95 = scmp.eq.s32.totalorder %s19, 0
      %p96 = por %p94, %p95
      %p97 = scmp.ne.s32.totalorder %s83, %s84
      %p98 = scmp.eq.s32.totalorder %s20, 1
      %p99 = por %p97, %p98
      %p101 = scmp.ne.s32.totalorder %s84, %s100
      %p102 = scmp.eq.s32.totalorder %s20, 0
      %p103 = por %p101, %p102
      %s104 = ssub.s32 %s21, %s33
      %s105 = ssub.s32 %s22, %s29
      %s106 = sor.u32 %s104, %s105
      %p107 = scmp.eq.s32.totalorder %s106, 0
      %s109 = sadd.s32 %s108, 1
      %s110 = scalar_select %p107, %s108, %s109
      %p113 = pneg %p107
      %p114 = scmp.eq.s32.totalorder %s14, 1
      %p115 = por %p113, %p114
      %p116 = scmp.ne.s32.totalorder %s108, %s111
      %p117 = scmp.eq.s32.totalorder %s14, 0
      %p118 = por %p116, %p117
      %p119 = scmp.ne.s32.totalorder %s108, %s111
      %p120 = scmp.eq.s32.totalorder %s19, 1
      %p121 = por %p119, %p120
      %p122 = scmp.ne.s32.totalorder %s111, %s112
      %p123 = scmp.eq.s32.totalorder %s19, 0
      %p124 = por %p122, %p123
      %p125 = scmp.ne.s32.totalorder %s111, %s112
      %p126 = scmp.eq.s32.totalorder %s20, 1
      %p127 = por %p125, %p126
      %p129 = scmp.ne.s32.totalorder %s112, %s128
      %p130 = scmp.eq.s32.totalorder %s20, 0
      %p131 = por %p129, %p130
      %p132 = scmp.le.s32.totalorder 1, %s14
      %p133 = scmp.lt.s32.totalorder %s14, 3
      %p134 = pnand %p132, %p133
      %p135 = pneg %p134
      // Predicated region
      $region9: #{tpu_custom_call.1} parent=5 // pred_check
        _
      $region10: #{tpu_custom_call.1} parent=5 // pred_check_branch
        %137 = sbr.rel (%p134) target = $region12
      $region11: #{tpu_custom_call.1} parent=5 // pred_region
        %s138 = ssub.s32 %s14, 1
        // Predicated region
        $region13: #{tpu_custom_call.1} parent=11 // pred_check
          %p139 = pneg %p47
        $region14: #{tpu_custom_call.1} parent=11 // pred_check_branch
          %141 = sbr.rel (%p139) target = $region16
        $region15: #{tpu_custom_call.1} parent=11 // pred_region
          %143 = vsyncadd [#allocation4], 0
          %s145 = sshll.u32 %s0, 4
          %s146 = int_to_ptr.hbm [resolvable:$true] %s145
          %148 = dma.hbm_to_smem %s146, 16, [#allocation2], [#allocation4]
        $region16: #{tpu_custom_call.1} parent=11 // pred_fallthru
          _
        // Predicated region
        $region17: #{tpu_custom_call.1} parent=11 // pred_check
          %p149 = pneg %p68
        $region18: #{tpu_custom_call.1} parent=11 // pred_check_branch
          %151 = sbr.rel (%p149) target = $region20
        $region19: #{tpu_custom_call.1} parent=11 // pred_region
          %153 = vsyncadd [#allocation6], 0
          %s155 = sshll.u32 %s1, 4
          %s156 = int_to_ptr.hbm [resolvable:$true] %s155
          %158 = dma.hbm_to_smem %s156, 16, [#allocation5], [#allocation6]
        $region20: #{tpu_custom_call.1} parent=11 // pred_fallthru
          _
      $region12: #{tpu_custom_call.1} parent=5 // pred_fallthru
        _
      %p159 = scmp.lt.s32.totalorder %s14, 2
      // Predicated region
      $region21: #{tpu_custom_call.1} parent=5 // pred_check
        %p160 = pneg %p159
      $region22: #{tpu_custom_call.1} parent=5 // pred_check_branch
        %162 = sbr.rel (%p160) target = $region24
      $region23: #{tpu_custom_call.1} parent=5 // pred_region
        // Predicated region
        $region25: #{tpu_custom_call.1} parent=23 // pred_check
          %p163 = pneg %p90
        $region26: #{tpu_custom_call.1} parent=23 // pred_check_branch
          %165 = sbr.rel (%p163) target = $region28
        $region27: #{tpu_custom_call.1} parent=23 // pred_region
          %s166 = sand.u32 %s80, 1
          %s167 = scalar_lea.sflag [#allocation3], %s166
          %s168 = sand.u32 %s80, 1
          %s169 = smul.addr %s168, 4
          %s170 = scalar_lea.vmem [#allocation7], %s169
          %172 = vsyncadd %s167, 0
          %s173 = sadd.s32 %s22, %s21
          %s174 = smul.addr %s173, 4
          %s175 = scalar_lea.hbm %s2, %s174
          %s177 = sshll.u32 %s175, 4
          %s178 = int_to_ptr.hbm [resolvable:$true] %s177
          %s179 = sshll.u32 %s170, 4
          %s180 = int_to_ptr.vmem [resolvable:$true] %s179
          %182 = dma.hbm_to_vmem [thread:$0]  %s178, 64, %s180, %s167
        $region28: #{tpu_custom_call.1} parent=23 // pred_fallthru
          _
      $region24: #{tpu_custom_call.1} parent=5 // pred_fallthru
        _
      %p183 = scmp.le.s32.totalorder 1, %s14
      %p184 = scmp.lt.s32.totalorder %s14, 3
      %p185 = pnand %p183, %p184
      %p186 = pneg %p185
      // Predicated region
      $region29: #{tpu_custom_call.1} parent=5 // pred_check
        _
      $region30: #{tpu_custom_call.1} parent=5 // pred_check_branch
        %188 = sbr.rel (%p185) target = $region32
      $region31: #{tpu_custom_call.1} parent=5 // pred_region
        %s189 = ssub.s32 %s14, 1
        // Predicated region
        $region33: #{tpu_custom_call.1} parent=31 // pred_check
          %p190 = pneg %p47
        $region34: #{tpu_custom_call.1} parent=31 // pred_check_branch
          %192 = sbr.rel (%p190) target = $region36
        $region35: #{tpu_custom_call.1} parent=31 // pred_region
          %194 = dma.done [#allocation4], 16
        $region36: #{tpu_custom_call.1} parent=31 // pred_fallthru
          _
        // Predicated region
        $region37: #{tpu_custom_call.1} parent=31 // pred_check
          %p195 = pneg %p68
        $region38: #{tpu_custom_call.1} parent=31 // pred_check_branch
          %197 = sbr.rel (%p195) target = $region40
        $region39: #{tpu_custom_call.1} parent=31 // pred_region
          %199 = dma.done [#allocation6], 16
        $region40: #{tpu_custom_call.1} parent=31 // pred_fallthru
          _
        %s200 = sand.u32 %s83, 1
        %s201 = scalar_lea.sflag [#allocation3], %s200
        %s202 = sand.u32 %s83, 1
        %s203 = smul.addr %s202, 4
        %s204 = scalar_lea.vmem [#allocation7], %s203
        // Predicated region
        $region41: #{tpu_custom_call.1} parent=31 // pred_check
          %p205 = pneg %p96
        $region42: #{tpu_custom_call.1} parent=31 // pred_check_branch
          %207 = sbr.rel (%p205) target = $region44
        $region43: #{tpu_custom_call.1} parent=31 // pred_region
          %209 = dma.done %s201, 64
        $region44: #{tpu_custom_call.1} parent=31 // pred_fallthru
          _
        %210 = sfence
        %p211 = pneg %p47
        %p212 = pneg %p44
        %p213 = pneg %p68
        %p214 = pneg %p65
        %s215 = sand.u32 %s83, 1
        %s216 = scalar_lea.sflag [#allocation3], %s215
        %s217 = sand.u32 %s83, 1
        %s218 = smul.addr %s217, 4
        %s219 = scalar_lea.vmem [#allocation7], %s218
        %p220 = pneg %p96
        %p221 = pneg %p93
        %p222 = pneg %p124
        %p223 = pneg %p121
        %p224 = scmp.lt.s32.totalorder %s23, 1
        %s225 = scalar_select %p224, %s23, 1
        %p226 = scmp.lt.s32.totalorder %s24, 0
        %s227 = scalar_select %p226, %s24, 0
        %s228 = sadd.s32 %s227, %s225
        %s229 = smul.addr %s228, 4
        %s230 = scalar_lea.vmem %s3, %s229
        %p231 = scmp.lt.s32.totalorder %s23, 1
        %s232 = scalar_select %p231, %s23, 1
        %p233 = scmp.lt.s32.totalorder %s24, 0
        %s234 = scalar_select %p233, %s24, 0
        %s235 = sadd.s32 %s234, %s232
        %s236 = smul.addr %s235, 4
        %s237 = scalar_lea.vmem %s3, %s236
        %v238 = vld [vmem:[%s204] sm:$0x1]
        %v239 = vld [vmem:[%s204 + $0x1] sm:$0x1]
        %v240 = vld [vmem:[%s204 + $0x2] sm:$0x1]
        %v241 = vld [vmem:[%s204 + $0x3] sm:$0x1]
        %s242 = sld [smem:[#allocation2]]
        %v243 = vstv %s242
        %v244 = vmul.f32 %v243, %v238
        %s245 = sld [smem:[#allocation5]]
        %v246 = vstv %s245
        %v247 = vadd.f32 %v244, %v246
        %s248 = sld [smem:[#allocation2 + $0x1]]
        %v249 = vstv %s248
        %v250 = vmul.f32 %v249, %v239
        %v251 = vadd.f32 %v247, %v250
        %s252 = sld [smem:[#allocation2 + $0x2]]
        %v253 = vstv %s252
        %v254 = vmul.f32 %v253, %v240
        %v255 = vadd.f32 %v251, %v254
        %s256 = sld [smem:[#allocation2 + $0x3]]
        %v257 = vstv %s256
        %v258 = vmul.f32 %v257, %v241
        %v259 = vadd.f32 %v255, %v258
        %vm260 = vcmask 122880
        %261 = vst.msk [vmem:[%s237] sm:$0x1] %vm260, %v259
        %s262 = sld [smem:[#allocation2 + $0x4]]
        %v263 = vstv %s262
        %v264 = vmul.f32 %v263, %v238
        %s265 = sld [smem:[#allocation5 + $0x1]]
        %v266 = vstv %s265
        %v267 = vadd.f32 %v264, %v266
        %s268 = sld [smem:[#allocation2 + $0x5]]
        %v269 = vstv %s268
        %v270 = vmul.f32 %v269, %v239
        %v271 = vadd.f32 %v267, %v270
        %s272 = sld [smem:[#allocation2 + $0x6]]
        %v273 = vstv %s272
        %v274 = vmul.f32 %v273, %v240
        %v275 = vadd.f32 %v271, %v274
        %s276 = sld [smem:[#allocation2 + $0x7]]
        %v277 = vstv %s276
        %v278 = vmul.f32 %v277, %v241
        %v279 = vadd.f32 %v275, %v278
        %280 = vst.msk [vmem:[%s237 + $0x1] sm:$0x1] %vm260, %v279
        %s281 = sld [smem:[#allocation2 + $0x8]]
        %v282 = vstv %s281
        %v283 = vmul.f32 %v282, %v238
        %s284 = sld [smem:[#allocation5 + $0x2]]
        %v285 = vstv %s284
        %v286 = vadd.f32 %v283, %v285
        %s287 = sld [smem:[#allocation2 + $0x9]]
        %v288 = vstv %s287
        %v289 = vmul.f32 %v288, %v239
        %v290 = vadd.f32 %v286, %v289
        %s291 = sld [smem:[#allocation2 + $0xa]]
        %v292 = vstv %s291
        %v293 = vmul.f32 %v292, %v240
        %v294 = vadd.f32 %v290, %v293
        %s295 = sld [smem:[#allocation2 + $0xb]]
        %v296 = vstv %s295
        %v297 = vmul.f32 %v296, %v241
        %v298 = vadd.f32 %v294, %v297
        %299 = vst.msk [vmem:[%s237 + $0x2] sm:$0x1] %vm260, %v298
        %p300 = scmp.lt.s32.totalorder %s23, 1
        %s301 = scalar_select %p300, %s23, 1
        %p302 = scmp.lt.s32.totalorder %s24, 0
        %s303 = scalar_select %p302, %s24, 0
        %s304 = sadd.s32 %s303, %s301
        %s305 = smul.addr %s304, 4
        %s306 = scalar_lea.vmem %s3, %s305
        // Predicated region
        $region45: #{tpu_custom_call.1} parent=31 // pred_check
          %p307 = pneg %p121
        $region46: #{tpu_custom_call.1} parent=31 // pred_check_branch
          %309 = sbr.rel (%p307) target = $region48
        $region47: #{tpu_custom_call.1} parent=31 // pred_region
          _
        $region48: #{tpu_custom_call.1} parent=31 // pred_fallthru
          _
      $region32: #{tpu_custom_call.1} parent=5 // pred_fallthru
        _
      %p310 = scmp.le.s32.totalorder 2, %s14
      // Predicated region
      $region49: #{tpu_custom_call.1} parent=5 // pred_check
        %p311 = pneg %p310
      $region50: #{tpu_custom_call.1} parent=5 // pred_check_branch
        %313 = sbr.rel (%p311) target = $region52
      $region51: #{tpu_custom_call.1} parent=5 // pred_region
        %s314 = ssub.s32 %s14, 2
        // Predicated region
        $region53: #{tpu_custom_call.1} parent=51 // pred_check
          %p315 = pneg %p127
        $region54: #{tpu_custom_call.1} parent=51 // pred_check_branch
          %317 = sbr.rel (%p315) target = $region56
        $region55: #{tpu_custom_call.1} parent=51 // pred_region
          %p318 = scmp.lt.s32.totalorder %s25, 1
          %s319 = scalar_select %p318, %s25, 1
          %p320 = scmp.lt.s32.totalorder %s26, 0
          %s321 = scalar_select %p320, %s26, 0
          %s322 = sadd.s32 %s321, %s319
          %s323 = smul.addr %s322, 4
          %s324 = scalar_lea.vmem %s3, %s323
        $region56: #{tpu_custom_call.1} parent=51 // pred_fallthru
          _
      $region52: #{tpu_custom_call.1} parent=5 // pred_fallthru
        _
    $region6: #{tpu_custom_call.1} parent=1 // loop_footer
      %s18 = sadd.s32 1, %s14
    $region7: #{tpu_custom_call.1} parent=1 // loop_footer_branch
      %13 = sbr.rel target = $region3
    $region8: #{tpu_custom_call.1} parent=1 // loop_exit
      _
    %325 = vsyncpa [#allocation3], 1
    %s326 = scalar_lea.sflag [#allocation3], 1
    %327 = vsyncpa %s326, 1
    %328 = vsyncpa [#allocation4], 1
    %s329 = scalar_lea.sflag [#allocation4], 1
    %330 = vsyncpa %s329, 1
    %331 = vsyncpa [#allocation6], 1

</llo_original>
